<compile_context>
chip_gen: v5e
topology: v5e:2x2
jax: 0.10.0
libtpu: 0.0.40
codegen_flags: <defaults>
</compile_context>

<pallas_src>
import math

import jax
import jax.numpy as jnp
from jax.experimental import pallas as pl
from jax.experimental.pallas import tpu as pltpu


# ----------------------------------------------------------------------------
# Tile selection helpers
# ----------------------------------------------------------------------------
def _pick_tile(extent, unit):
    """Largest tile from a fixed menu that divides `extent` and is a multiple
    of `unit` (sublane=8 / lane=128 alignment). Falls back to the full extent
    (block == full array dim is always legal)."""
    for c in (512, 256, 128, 64, 32, 16, 8):
        if c >= unit and c % unit == 0 and extent % c == 0:
            return c
    return extent


def _shrink_to_budget(bA, bB, A, B, inner, itemsize, unit,
                      budget=8 * 1024 * 1024):
    """Halve tiles (keeping divisibility + alignment) until one in+out block
    pair, double-buffered, fits the VMEM budget (v7x has only 64 MiB VMEM)."""
    def cost(a, b):
        return a * b * inner * itemsize * 4  # in + out, x2 double-buffering

    def can_halve(b, full):
        nb = b // 2
        return nb >= unit and nb % unit == 0 and full % nb == 0

    while cost(bA, bB) > budget:
        if bB >= bA and can_halve(bB, B):
            bB //= 2
        elif can_halve(bA, A):
            bA //= 2
        elif can_halve(bB, B):
            bB //= 2
        else:
            break
    return bA, bB


# ----------------------------------------------------------------------------
# Kernels
# ----------------------------------------------------------------------------
def _transpose_keep_lane_kernel(x_ref, o_ref):
    # x block: (1, bA, 1, bB, post)  ->  o block: (1, bB, 1, bA, post)
    # Lane (post) axis untouched; swap the two leading tile axes.
    o_ref[0, :, 0, :, :] = jnp.swapaxes(x_ref[0, :, 0, :, :], 0, 1)


def _transpose_last_kernel(x_ref, o_ref):
    # x block: (1, bA, mid, bB)  ->  o block: (1, bB, mid, bA)
    # True lane<->sublane transpose (XLU) per `mid` slice.
    mid = x_ref.shape[2]
    if mid == 1:
        o_ref[0, :, 0, :] = x_ref[0, :, 0, :].T
    else:
        @pl.loop(0, mid)
        def _(m):
            o_ref[0, :, m, :] = x_ref[0, :, m, :].T


# ----------------------------------------------------------------------------
# Wrapper: torch.transpose(x, dim0, dim1)
# ----------------------------------------------------------------------------
def pallas_transpose(x, dim0, dim1):
    nd = x.ndim
    a = dim0 % nd
    b = dim1 % nd
    if a == b:
        return x
    if a > b:
        a, b = b, a

    shape = x.shape
    pre = math.prod(shape[:a])
    A = shape[a]
    mid = math.prod(shape[a + 1:b])
    B = shape[b]
    post = math.prod(shape[b + 1:])
    out_full_shape = shape[:a] + (B,) + shape[a + 1:b] + (A,) + shape[b + 1:]

    itemsize = x.dtype.itemsize
    cost = pl.CostEstimate(flops=0, transcendentals=0,
                           bytes_accessed=2 * x.size * itemsize)

    if post > 1:
        # Swapped axes are both above the lane axis.
        xv = x.reshape(pre, A, mid, B, post)
        bA = _pick_tile(A, 8)
        bB = _pick_tile(B, 8)
        bA, bB = _shrink_to_budget(bA, bB, A, B, post, itemsize, 8)
        grid = (pre, mid, A // bA, B // bB)
        yv = pl.pallas_call(
            _transpose_keep_lane_kernel,
            out_shape=jax.ShapeDtypeStruct((pre, B, mid, A, post), x.dtype),
            grid=grid,
            in_specs=[pl.BlockSpec((1, bA, 1, bB, post),
                                   lambda p, m, i, j: (p, i, m, j, 0))],
            out_specs=pl.BlockSpec((1, bB, 1, bA, post),
                                   lambda p, m, i, j: (p, j, m, i, 0)),
            compiler_params=pltpu.CompilerParams(
                dimension_semantics=("parallel",) * 4),
            cost_estimate=cost,
        )(xv)
    else:
        # dim1 is the minor (lane) axis: lane-crossing transpose.
        xv = x.reshape(pre, A, mid, B)
        bA = _pick_tile(A, 128)   # bA becomes the OUTPUT lane dim
        bB = _pick_tile(B, 128)   # bB is the INPUT lane dim
        bA, bB = _shrink_to_budget(bA, bB, A, B, mid, itemsize, 128)
        grid = (pre, A // bA, B // bB)
        yv = pl.pallas_call(
            _transpose_last_kernel,
            out_shape=jax.ShapeDtypeStruct((pre, B, mid, A), x.dtype),
            grid=grid,
            in_specs=[pl.BlockSpec((1, bA, mid, bB),
                                   lambda p, i, j: (p, i, 0, j))],
            out_specs=pl.BlockSpec((1, bB, mid, bA),
                                   lambda p, i, j: (p, j, 0, i)),
            compiler_params=pltpu.CompilerParams(
                dimension_semantics=("parallel",) * 3),
            cost_estimate=cost,
        )(xv)

    return yv.reshape(out_full_shape)


# ----------------------------------------------------------------------------
# Demo / correctness check
# ----------------------------------------------------------------------------
if __name__ == "__main__":
    key = jax.random.PRNGKey(0)
    # AV-HuBERT uses Transpose(1, 2) to swap channel/time axes around convs.
    x = jax.random.normal(key, (2, 16, 8, 128), dtype=jnp.float32)

    # Transpose(1, 2): lane-preserving path.
    t12 = jax.jit(lambda v: pallas_transpose(v, 1, 2))
    y = t12(x)
    jax.block_until_ready(y)
    assert y.shape == (2, 8, 16, 128)
    assert bool(jnp.allclose(y, jnp.swapaxes(x, 1, 2)))

    # Transpose(2, 3): lane-crossing (XLU) path.
    t23 = jax.jit(lambda v: pallas_transpose(v, 2, 3))
    z = t23(x)
    jax.block_until_ready(z)
    assert z.shape == (2, 16, 128, 8)
    assert bool(jnp.allclose(z, jnp.swapaxes(x, 2, 3)))

    print("KERNEL_OK")
</pallas_src>

<mosaic_0001>
module attributes {stable_mosaic.version = 11 : i64} {
  func.func @_transpose_keep_lane_kernel(%arg0: i32, %arg1: i32, %arg2: i32, %arg3: i32, %arg4: memref<1x16x1x8x128xf32, #tpu.memory_space<vmem>>, %arg5: memref<1x8x1x16x128xf32, #tpu.memory_space<vmem>>) attributes {dimension_semantics = [#tpu.dimension_semantics<parallel>, #tpu.dimension_semantics<parallel>, #tpu.dimension_semantics<parallel>, #tpu.dimension_semantics<parallel>], iteration_bounds = array<i64: 2, 1, 1, 1>, scalar_prefetch = 0 : i64, scratch_operands = 0 : i64, tpu.core_type = #tpu.core_type<tc>, window_params = [{transform_indices = @transform_0, window_bounds = array<i64: 1, 16, 1, 8, 128>}, {transform_indices = @transform_1, window_bounds = array<i64: 1, 8, 1, 16, 128>}]} {
    %c0 = arith.constant 0 : index
    %c0_0 = arith.constant 0 : index
    %c0_1 = arith.constant 0 : index
    %c0_2 = arith.constant 0 : index
    %c0_3 = arith.constant 0 : index
    %0 = vector.load %arg4[%c0, %c0_0, %c0_1, %c0_2, %c0_3] : memref<1x16x1x8x128xf32, #tpu.memory_space<vmem>>, vector<1x16x1x8x128xf32>
    %1 = vector.shape_cast %0 : vector<1x16x1x8x128xf32> to vector<16x8x128xf32>
    %2 = tpu.transpose %1, [1, 0, 2] : vector<16x8x128xf32> -> vector<8x16x128xf32>
    %c0_4 = arith.constant 0 : index
    %c0_5 = arith.constant 0 : index
    %c0_6 = arith.constant 0 : index
    %c0_7 = arith.constant 0 : index
    %c0_8 = arith.constant 0 : index
    %3 = vector.load %arg5[%c0_4, %c0_5, %c0_6, %c0_7, %c0_8] : memref<1x8x1x16x128xf32, #tpu.memory_space<vmem>>, vector<1x8x1x16x128xf32>
    %4 = vector.shape_cast %3 : vector<1x8x1x16x128xf32> to vector<8x16x128xf32>
    %5 = vector.shape_cast %2 : vector<8x16x128xf32> to vector<1x8x1x16x128xf32>
    tpu.vector_store %arg5[%c0_4, %c0_5, %c0_6, %c0_7, %c0_8], %5 {strides = array<i32>} : memref<1x8x1x16x128xf32, #tpu.memory_space<vmem>>, vector<1x8x1x16x128xf32>,
    return
  }
  func.func @transform_0(%arg0: i32, %arg1: i32, %arg2: i32, %arg3: i32) -> (i32, i32, i32, i32, i32) {
    %c0_i32 = arith.constant 0 : i32
    %c0_i32_0 = arith.constant 0 : i32
    return %arg0, %arg2, %arg1, %arg3, %c0_i32 : i32, i32, i32, i32, i32
  }
  func.func @transform_1(%arg0: i32, %arg1: i32, %arg2: i32, %arg3: i32) -> (i32, i32, i32, i32, i32) {
    %c0_i32 = arith.constant 0 : i32
    %c0_i32_0 = arith.constant 0 : i32
    return %arg0, %arg3, %arg1, %arg2, %c0_i32 : i32, i32, i32, i32, i32
  }
}

</mosaic_0001>

<llo_original>
// kernel: _lambda_.1
$region0: #{_lambda_.1}
  #allocation0 [shape = 'u32[]', space=smem, size = 0x4, offset = 0x4, fixed_abs, tag = 'smem constant byte address 0x4 - core index']
  #allocation1 [shape = 'u32[72,128]{1,0:T(1,128)}', space=vmem, size = 0x9000, scoped, tag = 'internal scratch']
  %s0 = inlined_call_operand.hbm [shape: f32[2,16,1,8,128], index: 0, kind: input, shape index: {}]
  %s1 = inlined_call_operand.hbm [shape: f32[2,8,1,16,128], index: 1, kind: output, shape index: {}]
  %s2 = sld [smem:[#allocation0]]
  $region41: #{_lambda_.1} parent=0
    _
  %s4 = ssub.s32 1, %s2
  %s5 = scalar_select 0, %s4, %s2
  $region1: #{_lambda_.1} parent=0
    #allocation2 [shape = 'u8[131072]{0}', space=vmem, size = 0x20000, scoped, tag = 'input window, operand 0']
    #allocation3 [shape = 's32[2]{0}', space=sflag, size = 0x8, scoped, tag = 'scoped memory for _lambda_.1']
    #allocation4 [shape = 's32[2]{0}', space=sflag, size = 0x8, scoped, tag = 'scoped memory for _lambda_.1']
    #allocation5 [shape = 'u8[131072]{0}', space=vmem, size = 0x20000, scoped, tag = 'output window, operand 0']
    %6 = vsyncpa [#allocation3], 0
    %s7 = scalar_lea.sflag [#allocation3], 1
    %8 = vsyncpa %s7, 0
    %9 = vsyncpa [#allocation4], 0
    %s10 = scalar_lea.sflag [#allocation4], 1
    %11 = vsyncpa %s10, 0
    loop: start=0, step=1, limit=4
    $region2: #{_lambda_.1} parent=1 // loop_pre_header
      _
    $region3: #{_lambda_.1} parent=1 // loop_header
      %s13 = sphi 0, %s17
      %p14 = scmp.ge.s32.totalorder %s13, 4
      %s20 = sphi 0, %s46
      %s21 = sphi 0, %s42
      %s22 = sphi 0, %s38
      %s23 = sphi 0, %s34
      %s24 = sphi 0, %s20
      %s25 = sphi 0, %s21
      %s26 = sphi 0, %s22
      %s27 = sphi 0, %s23
      %s28 = sphi 0, %s24
      %s29 = sphi 0, %s25
      %s30 = sphi 0, %s26
      %s31 = sphi 0, %s27
      %s55 = sphi 0, %s57
      %s58 = sphi 0, %s55
      %s59 = sphi 0, %s58
      %s75 = sphi 0, %s59
      %s87 = sphi 0, %s89
      %s90 = sphi 0, %s87
      %s91 = sphi 0, %s90
      %s107 = sphi 0, %s91
    $region4: #{_lambda_.1} parent=1 // loop_header_branch
      %16 = sbr.rel (%p14) target = $region8
    $region5: #{_lambda_.1} parent=1 // loop_body
      %s18 = ssub.s32 %s13, 1
      %s19 = ssub.s32 %s13, 2
      %s32 = sadd.s32 1, %s23
      %p33 = scmp.ge.s32.totalorder %s32, 1
      %s34 = scalar_select %p33, 0, %s32
      %s35 = sadd.s32 1, %s22
      %s36 = scalar_select %p33, %s35, %s22
      %p37 = scmp.ge.s32.totalorder %s36, 1
      %s38 = scalar_select %p37, 0, %s36
      %s39 = sadd.s32 1, %s21
      %s40 = scalar_select %p37, %s39, %s21
      %p41 = scmp.ge.s32.totalorder %s40, 1
      %s42 = scalar_select %p41, 0, %s40
      %s43 = sadd.s32 1, %s20
      %s44 = scalar_select %p41, %s43, %s20
      %p45 = scmp.ge.s32.totalorder %s44, 2
      %s46 = scalar_select %p45, 0, %s44
      %s47 = ssub.s32 %s20, %s46
      %s48 = ssub.s32 %s22, %s38
      %s49 = sor.u32 %s47, %s48
      %s50 = ssub.s32 %s21, %s42
      %s51 = sor.u32 %s49, %s50
      %s52 = ssub.s32 %s23, %s34
      %s53 = sor.u32 %s51, %s52
      %p54 = scmp.eq.s32.totalorder %s53, 0
      %s56 = sadd.s32 %s55, 1
      %s57 = scalar_select %p54, %s55, %s56
      %p60 = pneg %p54
      %p61 = scmp.eq.s32.totalorder %s13, 1
      %p62 = por %p60, %p61
      %p63 = scmp.ne.s32.totalorder %s55, %s58
      %p64 = scmp.eq.s32.totalorder %s13, 0
      %p65 = por %p63, %p64
      %p66 = scmp.ne.s32.totalorder %s55, %s58
      %p67 = scmp.eq.s32.totalorder %s18, 1
      %p68 = por %p66, %p67
      %p69 = scmp.ne.s32.totalorder %s58, %s59
      %p70 = scmp.eq.s32.totalorder %s18, 0
      %p71 = por %p69, %p70
      %p72 = scmp.ne.s32.totalorder %s58, %s59
      %p73 = scmp.eq.s32.totalorder %s19, 1
      %p74 = por %p72, %p73
      %p76 = scmp.ne.s32.totalorder %s59, %s75
      %p77 = scmp.eq.s32.totalorder %s19, 0
      %p78 = por %p76, %p77
      %s79 = ssub.s32 %s20, %s46
      %s80 = ssub.s32 %s23, %s34
      %s81 = sor.u32 %s79, %s80
      %s82 = ssub.s32 %s21, %s42
      %s83 = sor.u32 %s81, %s82
      %s84 = ssub.s32 %s22, %s38
      %s85 = sor.u32 %s83, %s84
      %p86 = scmp.eq.s32.totalorder %s85, 0
      %s88 = sadd.s32 %s87, 1
      %s89 = scalar_select %p86, %s87, %s88
      %p92 = pneg %p86
      %p93 = scmp.eq.s32.totalorder %s13, 1
      %p94 = por %p92, %p93
      %p95 = scmp.ne.s32.totalorder %s87, %s90
      %p96 = scmp.eq.s32.totalorder %s13, 0
      %p97 = por %p95, %p96
      %p98 = scmp.ne.s32.totalorder %s87, %s90
      %p99 = scmp.eq.s32.totalorder %s18, 1
      %p100 = por %p98, %p99
      %p101 = scmp.ne.s32.totalorder %s90, %s91
      %p102 = scmp.eq.s32.totalorder %s18, 0
      %p103 = por %p101, %p102
      %p104 = scmp.ne.s32.totalorder %s90, %s91
      %p105 = scmp.eq.s32.totalorder %s19, 1
      %p106 = por %p104, %p105
      %p108 = scmp.ne.s32.totalorder %s91, %s107
      %p109 = scmp.eq.s32.totalorder %s19, 0
      %p110 = por %p108, %p109
      %p111 = scmp.le.s32.totalorder 1, %s13
      %p112 = scmp.lt.s32.totalorder %s13, 3
      %p113 = pnand %p111, %p112
      %p114 = pneg %p113
      // Predicated region
      $region9: #{_lambda_.1} parent=5 // pred_check
        _
      $region10: #{_lambda_.1} parent=5 // pred_check_branch
        %116 = sbr.rel (%p113) target = $region12
      $region11: #{_lambda_.1} parent=5 // pred_region
        %s117 = ssub.s32 %s13, 1
      $region12: #{_lambda_.1} parent=5 // pred_fallthru
        _
      %p118 = scmp.lt.s32.totalorder %s13, 2
      // Predicated region
      $region13: #{_lambda_.1} parent=5 // pred_check
        %p119 = pneg %p118
      $region14: #{_lambda_.1} parent=5 // pred_check_branch
        %121 = sbr.rel (%p119) target = $region16
      $region15: #{_lambda_.1} parent=5 // pred_region
        // Predicated region
        $region17: #{_lambda_.1} parent=15 // pred_check
          %p122 = pneg %p65
        $region18: #{_lambda_.1} parent=15 // pred_check_branch
          %124 = sbr.rel (%p122) target = $region20
        $region19: #{_lambda_.1} parent=15 // pred_region
          %s125 = sand.u32 %s55, 1
          %s126 = scalar_lea.sflag [#allocation3], %s125
          %s127 = sand.u32 %s55, 1
          %s128 = smul.addr %s127, 128
          %s129 = scalar_lea.vmem [#allocation2], %s128
          %s130 = smul.u32 16, %s22
          %132 = vsyncadd %s126, 0
          %s133 = sadd.s32 %s23, %s21
          %s134 = sadd.s32 %s133, %s130
          %s135 = smul.addr %s20, 16
          %s136 = sadd.s32 %s134, %s135
          %s137 = smul.addr %s136, 8
          %s138 = scalar_lea.hbm %s0, %s137
          %s139 = sshll.u32 %s138, 4
          %s140 = int_to_ptr.hbm [resolvable:$true] %s139
          %s141 = sshll.u32 %s129, 4
          %s142 = int_to_ptr.vmem [resolvable:$true] %s141
          %147 = dma.hbm_to_vmem [thread:$0]  %s140, 2048, %s142, %s126, 128, 128, 8
        $region20: #{_lambda_.1} parent=15 // pred_fallthru
          _
      $region16: #{_lambda_.1} parent=5 // pred_fallthru
        _
      %p148 = scmp.le.s32.totalorder 1, %s13
      %p149 = scmp.lt.s32.totalorder %s13, 3
      %p150 = pnand %p148, %p149
      %p151 = pneg %p150
      // Predicated region
      $region21: #{_lambda_.1} parent=5 // pred_check
        _
      $region22: #{_lambda_.1} parent=5 // pred_check_branch
        %153 = sbr.rel (%p150) target = $region24
      $region23: #{_lambda_.1} parent=5 // pred_region
        %s154 = ssub.s32 %s13, 1
        %s155 = sand.u32 %s58, 1
        %s156 = scalar_lea.sflag [#allocation3], %s155
        %s157 = sand.u32 %s58, 1
        %s158 = smul.addr %s157, 128
        %s159 = scalar_lea.vmem [#allocation2], %s158
        // Predicated region
        $region25: #{_lambda_.1} parent=23 // pred_check
          %p160 = pneg %p71
        $region26: #{_lambda_.1} parent=23 // pred_check_branch
          %162 = sbr.rel (%p160) target = $region28
        $region27: #{_lambda_.1} parent=23 // pred_region
          %164 = dma.done %s156, 2048
        $region28: #{_lambda_.1} parent=23 // pred_fallthru
          _
        %s165 = sand.u32 %s58, 1
        %s166 = scalar_lea.sflag [#allocation3], %s165
        %s167 = sand.u32 %s58, 1
        %s168 = smul.addr %s167, 128
        %s169 = scalar_lea.vmem [#allocation2], %s168
        %p170 = pneg %p71
        %p171 = pneg %p68
        %p172 = pneg %p103
        %p173 = pneg %p100
        %s174 = sand.u32 %s90, 1
        %s175 = scalar_lea.sflag [#allocation4], %s174
        %s176 = sand.u32 %s90, 1
        %s177 = smul.addr %s176, 128
        %s178 = scalar_lea.vmem [#allocation5], %s177
        %s179 = smul.u32 16, %s26
        %s180 = smul.u32 8, %s27
        %s181 = smul.u32 2, %s26
        %v182 = vld [vmem:[%s159] sm:$0xff]
        %v183 = vld [vmem:[%s159 + $0x8] sm:$0xff]
        %v184 = vld [vmem:[%s159 + $0x10] sm:$0xff]
        %v185 = vld [vmem:[%s159 + $0x18] sm:$0xff]
        %v186 = vld [vmem:[%s159 + $0x20] sm:$0xff]
        %v187 = vld [vmem:[%s159 + $0x28] sm:$0xff]
        %v188 = vld [vmem:[%s159 + $0x30] sm:$0xff]
        %v189 = vld [vmem:[%s159 + $0x38] sm:$0xff]
        %v190 = vld [vmem:[%s159 + $0x40] sm:$0xff]
        %v191 = vld [vmem:[%s159 + $0x48] sm:$0xff]
        %v192 = vld [vmem:[%s159 + $0x50] sm:$0xff]
        %v193 = vld [vmem:[%s159 + $0x58] sm:$0xff]
        %v194 = vld [vmem:[%s159 + $0x60] sm:$0xff]
        %v195 = vld [vmem:[%s159 + $0x68] sm:$0xff]
        %v196 = vld [vmem:[%s159 + $0x70] sm:$0xff]
        %v197 = vld [vmem:[%s159 + $0x78] sm:$0xff]
        %v198 = vrot.slane %v184, 4
        %vm199 = vcmask 1047556
        %v200 = vsel %vm199, %v198, %v182
        %v201 = vrot.slane %v182, 4
        %v202 = vsel %vm199, %v184, %v201
        %v204 = vunpack.c.l.s4 1983009808
        %v205 = vunpack.c.0.s8 %v204
        %v206 = vperm.slane %v200, %v205
        %v208 = vunpack.c.l.s4 1983009808
        %v209 = vunpack.c.0.s8 %v208
        %v210 = vperm.slane %v202, %v209
        %v211 = vrot.slane %v185, 4
        %v212 = vsel %vm199, %v211, %v183
        %v213 = vrot.slane %v183, 4
        %v214 = vsel %vm199, %v185, %v213
        %v216 = vunpack.c.l.s4 1983009808
        %v217 = vunpack.c.0.s8 %v216
        %v218 = vperm.slane %v212, %v217
        %v220 = vunpack.c.l.s4 1983009808
        %v221 = vunpack.c.0.s8 %v220
        %v222 = vperm.slane %v214, %v221
        %v223 = vrot.slane %v188, 4
        %v224 = vsel %vm199, %v223, %v186
        %v225 = vrot.slane %v186, 4
        %v226 = vsel %vm199, %v188, %v225
        %v228 = vunpack.c.l.s4 1983009808
        %v229 = vunpack.c.0.s8 %v228
        %v230 = vperm.slane %v224, %v229
        %v232 = vunpack.c.l.s4 1983009808
        %v233 = vunpack.c.0.s8 %v232
        %v234 = vperm.slane %v226, %v233
        %v235 = vrot.slane %v189, 4
        %v236 = vsel %vm199, %v235, %v187
        %v237 = vrot.slane %v187, 4
        %v238 = vsel %vm199, %v189, %v237
        %v240 = vunpack.c.l.s4 1983009808
        %v241 = vunpack.c.0.s8 %v240
        %v242 = vperm.slane %v236, %v241
        %v244 = vunpack.c.l.s4 1983009808
        %v245 = vunpack.c.0.s8 %v244
        %v246 = vperm.slane %v238, %v245
        %v247 = vrot.slane %v218, 4
        %v248 = vsel %vm199, %v247, %v206
        %v249 = vrot.slane %v206, 4
        %v250 = vsel %vm199, %v218, %v249
        %v252 = vunpack.c.l.s4 1934713408
        %v253 = vunpack.c.0.s8 %v252
        %v254 = vperm.slane %v248, %v253
        %v256 = vunpack.c.l.s4 1934713408
        %v257 = vunpack.c.0.s8 %v256
        %v258 = vperm.slane %v250, %v257
        %v259 = vrot.slane %v222, 4
        %v260 = vsel %vm199, %v259, %v210
        %v261 = vrot.slane %v210, 4
        %v262 = vsel %vm199, %v222, %v261
        %v264 = vunpack.c.l.s4 1934713408
        %v265 = vunpack.c.0.s8 %v264
        %v266 = vperm.slane %v260, %v265
        %v268 = vunpack.c.l.s4 1934713408
        %v269 = vunpack.c.0.s8 %v268
        %v270 = vperm.slane %v262, %v269
        %v271 = vrot.slane %v242, 4
        %v272 = vsel %vm199, %v271, %v230
        %v273 = vrot.slane %v230, 4
        %v274 = vsel %vm199, %v242, %v273
        %v276 = vunpack.c.l.s4 1934713408
        %v277 = vunpack.c.0.s8 %v276
        %v278 = vperm.slane %v272, %v277
        %v280 = vunpack.c.l.s4 1934713408
        %v281 = vunpack.c.0.s8 %v280
        %v282 = vperm.slane %v274, %v281
        %v283 = vrot.slane %v246, 4
        %v284 = vsel %vm199, %v283, %v234
        %v285 = vrot.slane %v234, 4
        %v286 = vsel %vm199, %v246, %v285
        %v288 = vunpack.c.l.s4 1934713408
        %v289 = vunpack.c.0.s8 %v288
        %v290 = vperm.slane %v284, %v289
        %v292 = vunpack.c.l.s4 1934713408
        %v293 = vunpack.c.0.s8 %v292
        %v294 = vperm.slane %v286, %v293
        %v295 = vrot.slane %v278, 4
        %v296 = vsel %vm199, %v295, %v254
        %v297 = vrot.slane %v254, 4
        %v298 = vsel %vm199, %v278, %v297
        %v299 = vrot.slane %v282, 4
        %v300 = vsel %vm199, %v299, %v258
        %v301 = vrot.slane %v258, 4
        %v302 = vsel %vm199, %v282, %v301
        %v303 = vrot.slane %v290, 4
        %v304 = vsel %vm199, %v303, %v266
        %v305 = vrot.slane %v266, 4
        %v306 = vsel %vm199, %v290, %v305
        %v307 = vrot.slane %v294, 4
        %v308 = vsel %vm199, %v307, %v270
        %v309 = vrot.slane %v270, 4
        %v310 = vsel %vm199, %v294, %v309
        %v311 = vrot.slane %v192, 4
        %v312 = vsel %vm199, %v311, %v190
        %v313 = vrot.slane %v190, 4
        %v314 = vsel %vm199, %v192, %v313
        %v316 = vunpack.c.l.s4 1983009808
        %v317 = vunpack.c.0.s8 %v316
        %v318 = vperm.slane %v312, %v317
        %v320 = vunpack.c.l.s4 1983009808
        %v321 = vunpack.c.0.s8 %v320
        %v322 = vperm.slane %v314, %v321
        %v323 = vrot.slane %v193, 4
        %v324 = vsel %vm199, %v323, %v191
        %v325 = vrot.slane %v191, 4
        %v326 = vsel %vm199, %v193, %v325
        %v328 = vunpack.c.l.s4 1983009808
        %v329 = vunpack.c.0.s8 %v328
        %v330 = vperm.slane %v324, %v329
        %v332 = vunpack.c.l.s4 1983009808
        %v333 = vunpack.c.0.s8 %v332
        %v334 = vperm.slane %v326, %v333
        %v335 = vrot.slane %v196, 4
        %v336 = vsel %vm199, %v335, %v194
        %v337 = vrot.slane %v194, 4
        %v338 = vsel %vm199, %v196, %v337
        %v340 = vunpack.c.l.s4 1983009808
        %v341 = vunpack.c.0.s8 %v340
        %v342 = vperm.slane %v336, %v341
        %v344 = vunpack.c.l.s4 1983009808
        %v345 = vunpack.c.0.s8 %v344
        %v346 = vperm.slane %v338, %v345
        %v347 = vrot.slane %v197, 4
        %v348 = vsel %vm199, %v347, %v195
        %v349 = vrot.slane %v195, 4
        %v350 = vsel %vm199, %v197, %v349
        %v352 = vunpack.c.l.s4 1983009808
        %v353 = vunpack.c.0.s8 %v352
        %v354 = vperm.slane %v348, %v353
        %v356 = vunpack.c.l.s4 1983009808
        %v357 = vunpack.c.0.s8 %v356
        %v358 = vperm.slane %v350, %v357
        %v359 = vrot.slane %v330, 4
        %v360 = vsel %vm199, %v359, %v318
        %v361 = vrot.slane %v318, 4
        %v362 = vsel %vm199, %v330, %v361
        %v364 = vunpack.c.l.s4 1934713408
        %v365 = vunpack.c.0.s8 %v364
        %v366 = vperm.slane %v360, %v365
        %v368 = vunpack.c.l.s4 1934713408
        %v369 = vunpack.c.0.s8 %v368
        %v370 = vperm.slane %v362, %v369
        %v371 = vrot.slane %v334, 4
        %v372 = vsel %vm199, %v371, %v322
        %v373 = vrot.slane %v322, 4
        %v374 = vsel %vm199, %v334, %v373
        %v376 = vunpack.c.l.s4 1934713408
        %v377 = vunpack.c.0.s8 %v376
        %v378 = vperm.slane %v372, %v377
        %v380 = vunpack.c.l.s4 1934713408
        %v381 = vunpack.c.0.s8 %v380
        %v382 = vperm.slane %v374, %v381
        %v383 = vrot.slane %v354, 4
        %v384 = vsel %vm199, %v383, %v342
        %v385 = vrot.slane %v342, 4
        %v386 = vsel %vm199, %v354, %v385
        %v388 = vunpack.c.l.s4 1934713408
        %v389 = vunpack.c.0.s8 %v388
        %v390 = vperm.slane %v384, %v389
        %v392 = vunpack.c.l.s4 1934713408
        %v393 = vunpack.c.0.s8 %v392
        %v394 = vperm.slane %v386, %v393
        %v395 = vrot.slane %v358, 4
        %v396 = vsel %vm199, %v395, %v346
        %v397 = vrot.slane %v346, 4
        %v398 = vsel %vm199, %v358, %v397
        %v400 = vunpack.c.l.s4 1934713408
        %v401 = vunpack.c.0.s8 %v400
        %v402 = vperm.slane %v396, %v401
        %v404 = vunpack.c.l.s4 1934713408
        %v405 = vunpack.c.0.s8 %v404
        %v406 = vperm.slane %v398, %v405
        %v407 = vrot.slane %v390, 4
        %v408 = vsel %vm199, %v407, %v366
        %v409 = vrot.slane %v366, 4
        %v410 = vsel %vm199, %v390, %v409
        %v411 = vrot.slane %v394, 4
        %v412 = vsel %vm199, %v411, %v370
        %v413 = vrot.slane %v370, 4
        %v414 = vsel %vm199, %v394, %v413
        %v415 = vrot.slane %v402, 4
        %v416 = vsel %vm199, %v415, %v378
        %v417 = vrot.slane %v378, 4
        %v418 = vsel %vm199, %v402, %v417
        %v419 = vrot.slane %v406, 4
        %v420 = vsel %vm199, %v419, %v382
        %v421 = vrot.slane %v382, 4
        %v422 = vsel %vm199, %v406, %v421
        %423 = vst [vmem:[%s178] sm:$0xff] %v296
        %424 = vst [vmem:[%s178 + $0x8] sm:$0xff] %v408
        %425 = vst [vmem:[%s178 + $0x10] sm:$0xff] %v298
        %426 = vst [vmem:[%s178 + $0x18] sm:$0xff] %v410
        %427 = vst [vmem:[%s178 + $0x20] sm:$0xff] %v300
        %428 = vst [vmem:[%s178 + $0x28] sm:$0xff] %v412
        %429 = vst [vmem:[%s178 + $0x30] sm:$0xff] %v302
        %430 = vst [vmem:[%s178 + $0x38] sm:$0xff] %v414
        %431 = vst [vmem:[%s178 + $0x40] sm:$0xff] %v304
        %432 = vst [vmem:[%s178 + $0x48] sm:$0xff] %v416
        %433 = vst [vmem:[%s178 + $0x50] sm:$0xff] %v306
        %434 = vst [vmem:[%s178 + $0x58] sm:$0xff] %v418
        %435 = vst [vmem:[%s178 + $0x60] sm:$0xff] %v308
        %436 = vst [vmem:[%s178 + $0x68] sm:$0xff] %v420
        %437 = vst [vmem:[%s178 + $0x70] sm:$0xff] %v310
        %438 = vst [vmem:[%s178 + $0x78] sm:$0xff] %v422
        %s439 = sand.u32 %s90, 1
        %s440 = scalar_lea.sflag [#allocation4], %s439
        %s441 = sand.u32 %s90, 1
        %s442 = smul.addr %s441, 128
        %s443 = scalar_lea.vmem [#allocation5], %s442
        // Predicated region
        $region29: #{_lambda_.1} parent=23 // pred_check
          %p444 = pneg %p100
        $region30: #{_lambda_.1} parent=23 // pred_check_branch
          %446 = sbr.rel (%p444) target = $region32
        $region31: #{_lambda_.1} parent=23 // pred_region
          %s447 = smul.u32 8, %s27
          %s448 = smul.u32 2, %s26
          %450 = vsyncadd %s440, 0
          %s451 = smul.addr %s25, 2
          %s452 = sadd.s32 %s448, %s451
          %s453 = smul.addr %s447, 2
          %s454 = sadd.s32 %s452, %s453
          %s455 = smul.addr %s24, 16
          %s456 = sadd.s32 %s454, %s455
          %s457 = smul.addr %s456, 8
          %s458 = scalar_lea.hbm %s1, %s457
          %s459 = sshll.u32 %s443, 4
          %s460 = int_to_ptr.vmem [resolvable:$true] %s459
          %s461 = sshll.u32 %s458, 4
          %s462 = int_to_ptr.hbm [resolvable:$true] %s461
          %467 = dma.vmem_to_hbm [thread:$0]  %s460, 2048, %s462, %s440, 128, 128, 8
        $region32: #{_lambda_.1} parent=23 // pred_fallthru
          _
      $region24: #{_lambda_.1} parent=5 // pred_fallthru
        _
      %p468 = scmp.le.s32.totalorder 2, %s13
      // Predicated region
      $region33: #{_lambda_.1} parent=5 // pred_check
        %p469 = pneg %p468
      $region34: #{_lambda_.1} parent=5 // pred_check_branch
        %471 = sbr.rel (%p469) target = $region36
      $region35: #{_lambda_.1} parent=5 // pred_region
        %s472 = ssub.s32 %s13, 2
        // Predicated region
        $region37: #{_lambda_.1} parent=35 // pred_check
          %p473 = pneg %p106
        $region38: #{_lambda_.1} parent=35 // pred_check_branch
          %475 = sbr.rel (%p473) target = $region40
        $region39: #{_lambda_.1} parent=35 // pred_region
          %s476 = sand.u32 %s91, 1
          %s477 = scalar_lea.sflag [#allocation4], %s476
          %s478 = sand.u32 %s91, 1
          %s479 = smul.addr %s478, 128
          %s480 = scalar_lea.vmem [#allocation5], %s479
          %482 = dma.done %s477, 2048
        $region40: #{_lambda_.1} parent=35 // pred_fallthru
          _
      $region36: #{_lambda_.1} parent=5 // pred_fallthru
        _
    $region6: #{_lambda_.1} parent=1 // loop_footer
      %s17 = sadd.s32 1, %s13
    $region7: #{_lambda_.1} parent=1 // loop_footer_branch
      %12 = sbr.rel target = $region3
    $region8: #{_lambda_.1} parent=1 // loop_exit
      _
    %483 = vsyncpa [#allocation3], 1
    %s484 = scalar_lea.sflag [#allocation3], 1
    %485 = vsyncpa %s484, 1
    %486 = vsyncpa [#allocation4], 1
    %s487 = scalar_lea.sflag [#allocation4], 1
    %488 = vsyncpa %s487, 1

</llo_original>
